<compile_context>
chip_gen: v7x
topology: tpu7x:2x2x1
jax: 0.10.0
libtpu: 0.0.40
codegen_flags: <defaults>
</compile_context>

<pallas_src>
import functools

import jax
import jax.numpy as jnp
from jax.experimental import pallas as pl
from jax.experimental.pallas import tpu as pltpu

_SUBLANES = 8
_LANES = 128


def _contrastive_cs_kernel(c1_ref, c2_ref, s1_ref, s2_ref,
                           out_c_ref, out_s_ref,
                           acc_c_ref, acc_s_ref,
                           *, margin, eps, batch, tile_b, tiles_per_core):
    core = pl.program_id(0)   # "parallel" axis (megacore split on v7x)
    i = pl.program_id(1)      # "arbitrary" batch-tile reduction axis

    @pl.when(i == 0)
    def _():
        acc_c_ref[...] = jnp.zeros_like(acc_c_ref)
        acc_s_ref[...] = jnp.zeros_like(acc_s_ref)

    # Upcast so bf16 inputs (half the HBM bytes) still accumulate in f32.
    c1 = c1_ref[...].astype(jnp.float32)
    c2 = c2_ref[...].astype(jnp.float32)
    s1 = s1_ref[...].astype(jnp.float32)
    s2 = s2_ref[...].astype(jnp.float32)

    dc = c1 - c2
    ds = s1 - s2

    # Per-sample squared distances: reduce the feature (lane) axis.
    dist_c = jnp.sum(dc * dc, axis=1, keepdims=True)   # (tile_b, 1)
    dist_s = jnp.sum(ds * ds, axis=1, keepdims=True)   # (tile_b, 1)

    hinge = jnp.maximum(margin - jnp.sqrt(dist_c + eps), 0.0)
    losses_c = hinge * hinge                            # (tile_b, 1)

    # Mask rows past the true batch (ragged last tile / clamped duplicate tile
    # when the tile count doesn't split evenly across cores).
    logical_tile = core * tiles_per_core + i
    row0 = logical_tile * tile_b
    rows = row0 + jax.lax.broadcasted_iota(jnp.int32, (tile_b, 1), 0)
    valid = rows < batch
    losses_c = jnp.where(valid, losses_c, 0.0)
    losses_s = jnp.where(valid, dist_s, 0.0)

    acc_c_ref[...] += jnp.sum(losses_c, axis=0, keepdims=True)   # (1, 1)
    acc_s_ref[...] += jnp.sum(losses_s, axis=0, keepdims=True)   # (1, 1)

    @pl.when(i == pl.num_programs(1) - 1)
    def _():
        # Lane-dense (8,128) output tile per core carrying the per-core sum
        # (broadcast; the wrapper reads element [core*8, 0]).
        out_c_ref[...] = jnp.broadcast_to(acc_c_ref[...], out_c_ref.shape)
        out_s_ref[...] = jnp.broadcast_to(acc_s_ref[...], out_s_ref.shape)


def _pick_tile_b(batch, feat, itemsize, budget_bytes=16 * 1024 * 1024):
    # 4 inputs x 2 pipeline buffers x (tile_b, feat) must fit the VMEM budget.
    # 16 MiB keeps ample headroom even for v7x (64 MiB physical / 32 MiB scoped).
    tb = budget_bytes // (4 * 2 * feat * itemsize)
    tb = max(_SUBLANES, (tb // _SUBLANES) * _SUBLANES)
    tb = min(tb, 2048)
    if tb >= batch:
        return batch
    return tb


def contrastive_loss_cs(output_c1, output_c2, output_s1, output_s2,
                        *, margin, eps=1e-9, tile_b=None, num_cores=2):
    """Pallas implementation of ContrastiveLoss_CS.forward.

    Inputs: (B, D) float arrays (f32 or bf16). Returns (loss_c, loss_s) scalars.
    """
    B, D = output_c1.shape
    itemsize = jnp.dtype(output_c1.dtype).itemsize
    if tile_b is None:
        tile_b = _pick_tile_b(B, D, itemsize)
    tile_b = min(int(tile_b), B)
    if tile_b < B:
        tile_b = max(_SUBLANES, (tile_b // _SUBLANES) * _SUBLANES)

    num_tiles = pl.cdiv(B, tile_b)
    nc = max(1, min(int(num_cores), num_tiles))   # core-split axis extent
    tiles_per_core = pl.cdiv(num_tiles, nc)

    def in_map(c, i):
        # Clamp so the (rare) overflow tile of the second core stays in bounds;
        # its contribution is masked to zero inside the kernel.
        return (jnp.minimum(c * tiles_per_core + i, num_tiles - 1), 0)

    in_spec = pl.BlockSpec((tile_b, D), in_map)
    out_spec = pl.BlockSpec((_SUBLANES, _LANES), lambda c, i: (c, 0))
    out_shape = jax.ShapeDtypeStruct((nc * _SUBLANES, _LANES), jnp.float32)

    kernel = functools.partial(
        _contrastive_cs_kernel,
        margin=float(margin), eps=float(eps), batch=B,
        tile_b=tile_b, tiles_per_core=tiles_per_core)

    cost = pl.CostEstimate(
        flops=6 * B * D + 8 * B,
        transcendentals=B,
        bytes_accessed=4 * B * D * itemsize + 2 * nc * _SUBLANES * _LANES * 4)

    sums_c, sums_s = pl.pallas_call(
        kernel,
        out_shape=(out_shape, out_shape),
        grid=(nc, tiles_per_core),
        in_specs=[in_spec, in_spec, in_spec, in_spec],
        out_specs=(out_spec, out_spec),
        scratch_shapes=[pltpu.VMEM((1, 1), jnp.float32),
                        pltpu.VMEM((1, 1), jnp.float32)],
        compiler_params=pltpu.CompilerParams(
            dimension_semantics=("parallel", "arbitrary"),
            vmem_limit_bytes=32 * 1024 * 1024),
        cost_estimate=cost,
    )(output_c1, output_c2, output_s1, output_s2)

    inv_b = 1.0 / float(B)
    loss_c = jnp.sum(sums_c[::_SUBLANES, 0]) * inv_b
    loss_s = jnp.sum(sums_s[::_SUBLANES, 0]) * inv_b
    return loss_c, loss_s


def _reference(c1, c2, s1, s2, margin, eps=1e-9):
    c1, c2 = c1.astype(jnp.float32), c2.astype(jnp.float32)
    s1, s2 = s1.astype(jnp.float32), s2.astype(jnp.float32)
    dist_c = jnp.sum((c1 - c2) ** 2, axis=1)
    dist_s = jnp.sum((s1 - s2) ** 2, axis=1)
    loss_c = jnp.mean(jnp.maximum(margin - jnp.sqrt(dist_c + eps), 0.0) ** 2)
    loss_s = jnp.mean(dist_s)
    return loss_c, loss_s


if __name__ == "__main__":
    margin = 1.0
    key = jax.random.PRNGKey(0)

    # Case 1: small (B, D) embeddings, single tile, single core slice.
    B, D = 8, 32
    k1, k2, k3, k4, key = jax.random.split(key, 5)
    c1 = jax.random.normal(k1, (B, D), dtype=jnp.float32)
    c2 = jax.random.normal(k2, (B, D), dtype=jnp.float32)
    s1 = jax.random.normal(k3, (B, D), dtype=jnp.float32)
    s2 = jax.random.normal(k4, (B, D), dtype=jnp.float32)

    loss_c, loss_s = contrastive_loss_cs(c1, c2, s1, s2, margin=margin)
    loss_c = jax.block_until_ready(loss_c)
    loss_s = jax.block_until_ready(loss_s)
    ref_c, ref_s = _reference(c1, c2, s1, s2, margin)
    assert jnp.allclose(loss_c, ref_c, rtol=1e-5, atol=1e-6), (loss_c, ref_c)
    assert jnp.allclose(loss_s, ref_s, rtol=1e-5, atol=1e-6), (loss_s, ref_s)

    # Case 2: exercise batch tiling, the 2-way core split, and ragged-tail
    # masking (B=20 with tile_b=8 -> 3 tiles, odd split across 2 cores).
    B2, D2 = 20, 32
    k1, k2, k3, k4, key = jax.random.split(key, 5)
    c1b = jax.random.normal(k1, (B2, D2), dtype=jnp.float32)
    c2b = jax.random.normal(k2, (B2, D2), dtype=jnp.float32)
    s1b = jax.random.normal(k3, (B2, D2), dtype=jnp.float32)
    s2b = jax.random.normal(k4, (B2, D2), dtype=jnp.float32)

    loss_c2, loss_s2 = contrastive_loss_cs(c1b, c2b, s1b, s2b,
                                           margin=margin, tile_b=8)
    loss_c2 = jax.block_until_ready(loss_c2)
    loss_s2 = jax.block_until_ready(loss_s2)
    ref_c2, ref_s2 = _reference(c1b, c2b, s1b, s2b, margin)
    assert jnp.allclose(loss_c2, ref_c2, rtol=1e-5, atol=1e-6), (loss_c2, ref_c2)
    assert jnp.allclose(loss_s2, ref_s2, rtol=1e-5, atol=1e-6), (loss_s2, ref_s2)

    print("KERNEL_OK")
</pallas_src>

<mosaic_0001>
module attributes {stable_mosaic.version = 11 : i64} {
  func.func @_contrastive_cs_kernel(%arg0: i32, %arg1: i32, %arg2: memref<8x32xf32, #tpu.memory_space<vmem>>, %arg3: memref<8x32xf32, #tpu.memory_space<vmem>>, %arg4: memref<8x32xf32, #tpu.memory_space<vmem>>, %arg5: memref<8x32xf32, #tpu.memory_space<vmem>>, %arg6: memref<8x128xf32, #tpu.memory_space<vmem>>, %arg7: memref<8x128xf32, #tpu.memory_space<vmem>>, %arg8: memref<1x1xf32, #tpu.memory_space<vmem>>, %arg9: memref<1x1xf32, #tpu.memory_space<vmem>>) attributes {dimension_semantics = [#tpu.dimension_semantics<parallel>, #tpu.dimension_semantics<arbitrary>], iteration_bounds = array<i64: 1, 1>, scalar_prefetch = 0 : i64, scratch_operands = 2 : i64, tpu.core_type = #tpu.core_type<tc>, window_params = [{transform_indices = @transform_0, window_bounds = array<i64: 8, 32>}, {transform_indices = @transform_1, window_bounds = array<i64: 8, 32>}, {transform_indices = @transform_2, window_bounds = array<i64: 8, 32>}, {transform_indices = @transform_3, window_bounds = array<i64: 8, 32>}, {transform_indices = @transform_4, window_bounds = array<i64: 8, 128>}, {transform_indices = @transform_5, window_bounds = array<i64: 8, 128>}]} {
    %c0_i32 = arith.constant 0 : i32
    %0 = arith.cmpi eq, %arg1, %c0_i32 : i32
    %1 = arith.extui %0 : i1 to i32
    %c0_i32_0 = arith.constant 0 : i32
    %2 = arith.cmpi ne, %1, %c0_i32_0 : i32
    scf.if %2 {
      %cst_27 = arith.constant 0.000000e+00 : f32
      %48 = vector.broadcast %cst_27 : f32 to vector<1x1xf32>
      %c0_28 = arith.constant 0 : index
      %c0_29 = arith.constant 0 : index
      %49 = vector.load %arg8[%c0_28, %c0_29] : memref<1x1xf32, #tpu.memory_space<vmem>>, vector<1x1xf32>
      tpu.vector_store %arg8[%c0_28, %c0_29], %48 {strides = array<i32>} : memref<1x1xf32, #tpu.memory_space<vmem>>, vector<1x1xf32>,
      %cst_30 = arith.constant 0.000000e+00 : f32
      %50 = vector.broadcast %cst_30 : f32 to vector<1x1xf32>
      %c0_31 = arith.constant 0 : index
      %c0_32 = arith.constant 0 : index
      %51 = vector.load %arg9[%c0_31, %c0_32] : memref<1x1xf32, #tpu.memory_space<vmem>>, vector<1x1xf32>
      tpu.vector_store %arg9[%c0_31, %c0_32], %50 {strides = array<i32>} : memref<1x1xf32, #tpu.memory_space<vmem>>, vector<1x1xf32>,
    } else {
    }
    %c0 = arith.constant 0 : index
    %c0_1 = arith.constant 0 : index
    %3 = vector.load %arg2[%c0, %c0_1] : memref<8x32xf32, #tpu.memory_space<vmem>>, vector<8x32xf32>
    %c0_2 = arith.constant 0 : index
    %c0_3 = arith.constant 0 : index
    %4 = vector.load %arg3[%c0_2, %c0_3] : memref<8x32xf32, #tpu.memory_space<vmem>>, vector<8x32xf32>
    %c0_4 = arith.constant 0 : index
    %c0_5 = arith.constant 0 : index
    %5 = vector.load %arg4[%c0_4, %c0_5] : memref<8x32xf32, #tpu.memory_space<vmem>>, vector<8x32xf32>
    %c0_6 = arith.constant 0 : index
    %c0_7 = arith.constant 0 : index
    %6 = vector.load %arg5[%c0_6, %c0_7] : memref<8x32xf32, #tpu.memory_space<vmem>>, vector<8x32xf32>
    %7 = arith.subf %3, %4 : vector<8x32xf32>
    %8 = arith.subf %5, %6 : vector<8x32xf32>
    %9 = arith.mulf %7, %7 : vector<8x32xf32>
    %cst = arith.constant dense<0.000000e+00> : vector<8xf32>
    %10 = vector.multi_reduction <add>, %9, %cst [1] : vector<8x32xf32> to vector<8xf32>
    %11 = vector.shape_cast %10 : vector<8xf32> to vector<8x1xf32>
    %12 = arith.mulf %8, %8 : vector<8x32xf32>
    %cst_8 = arith.constant dense<0.000000e+00> : vector<8xf32>
    %13 = vector.multi_reduction <add>, %12, %cst_8 [1] : vector<8x32xf32> to vector<8xf32>
    %14 = vector.shape_cast %13 : vector<8xf32> to vector<8x1xf32>
    %cst_9 = arith.constant 9.99999971E-10 : f32
    %15 = vector.broadcast %cst_9 : f32 to vector<8x1xf32>
    %16 = arith.addf %11, %15 : vector<8x1xf32>
    %17 = math.sqrt %16 : vector<8x1xf32>
    %cst_10 = arith.constant 1.000000e+00 : f32
    %18 = vector.broadcast %cst_10 : f32 to vector<8x1xf32>
    %19 = arith.subf %18, %17 : vector<8x1xf32>
    %cst_11 = arith.constant 0.000000e+00 : f32
    %20 = vector.broadcast %cst_11 : f32 to vector<8x1xf32>
    %21 = arith.maximumf %19, %20 : vector<8x1xf32>
    %22 = arith.mulf %21, %21 : vector<8x1xf32>
    %c1_i32 = arith.constant 1 : i32
    %23 = arith.muli %arg0, %c1_i32 : i32
    %24 = arith.addi %23, %arg1 : i32
    %c8_i32 = arith.constant 8 : i32
    %25 = arith.muli %24, %c8_i32 : i32
    %26 = tpu.iota {dimensions = array<i32: 0>} : vector<8x1xi32>
    %27 = vector.broadcast %25 : i32 to vector<8x1xi32>
    %28 = arith.addi %27, %26 : vector<8x1xi32>
    %c8_i32_12 = arith.constant 8 : i32
    %29 = vector.broadcast %c8_i32_12 : i32 to vector<8x1xi32>
    %30 = arith.cmpi slt, %28, %29 : vector<8x1xi32>
    %cst_13 = arith.constant 0.000000e+00 : f32
    %31 = vector.broadcast %cst_13 : f32 to vector<8x1xf32>
    %32 = arith.select %30, %22, %31 : vector<8x1xi1>, vector<8x1xf32>
    %cst_14 = arith.constant 0.000000e+00 : f32
    %33 = vector.broadcast %cst_14 : f32 to vector<8x1xf32>
    %34 = arith.select %30, %14, %33 : vector<8x1xi1>, vector<8x1xf32>
    %c0_15 = arith.constant 0 : index
    %c0_16 = arith.constant 0 : index
    %35 = vector.load %arg8[%c0_15, %c0_16] : memref<1x1xf32, #tpu.memory_space<vmem>>, vector<1x1xf32>
    %cst_17 = arith.constant dense<0.000000e+00> : vector<1xf32>
    %36 = vector.multi_reduction <add>, %32, %cst_17 [0] : vector<8x1xf32> to vector<1xf32>
    %37 = vector.shape_cast %36 : vector<1xf32> to vector<1x1xf32>
    %38 = arith.addf %35, %37 : vector<1x1xf32>
    %c0_18 = arith.constant 0 : index
    %c0_19 = arith.constant 0 : index
    %39 = vector.load %arg8[%c0_18, %c0_19] : memref<1x1xf32, #tpu.memory_space<vmem>>, vector<1x1xf32>
    tpu.vector_store %arg8[%c0_18, %c0_19], %38 {strides = array<i32>} : memref<1x1xf32, #tpu.memory_space<vmem>>, vector<1x1xf32>,
    %c0_20 = arith.constant 0 : index
    %c0_21 = arith.constant 0 : index
    %40 = vector.load %arg9[%c0_20, %c0_21] : memref<1x1xf32, #tpu.memory_space<vmem>>, vector<1x1xf32>
    %cst_22 = arith.constant dense<0.000000e+00> : vector<1xf32>
    %41 = vector.multi_reduction <add>, %34, %cst_22 [0] : vector<8x1xf32> to vector<1xf32>
    %42 = vector.shape_cast %41 : vector<1xf32> to vector<1x1xf32>
    %43 = arith.addf %40, %42 : vector<1x1xf32>
    %c0_23 = arith.constant 0 : index
    %c0_24 = arith.constant 0 : index
    %44 = vector.load %arg9[%c0_23, %c0_24] : memref<1x1xf32, #tpu.memory_space<vmem>>, vector<1x1xf32>
    tpu.vector_store %arg9[%c0_23, %c0_24], %43 {strides = array<i32>} : memref<1x1xf32, #tpu.memory_space<vmem>>, vector<1x1xf32>,
    %c0_i32_25 = arith.constant 0 : i32
    %45 = arith.cmpi eq, %arg1, %c0_i32_25 : i32
    %46 = arith.extui %45 : i1 to i32
    %c0_i32_26 = arith.constant 0 : i32
    %47 = arith.cmpi ne, %46, %c0_i32_26 : i32
    scf.if %47 {
      %c0_27 = arith.constant 0 : index
      %c0_28 = arith.constant 0 : index
      %48 = vector.load %arg8[%c0_27, %c0_28] : memref<1x1xf32, #tpu.memory_space<vmem>>, vector<1x1xf32>
      %49 = vector.shape_cast %48 : vector<1x1xf32> to vector<1x1xf32>
      %50 = vector.broadcast %49 : vector<1x1xf32> to vector<8x128xf32>
      %c0_29 = arith.constant 0 : index
      %c0_30 = arith.constant 0 : index
      %51 = vector.load %arg6[%c0_29, %c0_30] : memref<8x128xf32, #tpu.memory_space<vmem>>, vector<8x128xf32>
      tpu.vector_store %arg6[%c0_29, %c0_30], %50 {strides = array<i32>} : memref<8x128xf32, #tpu.memory_space<vmem>>, vector<8x128xf32>,
      %c0_31 = arith.constant 0 : index
      %c0_32 = arith.constant 0 : index
      %52 = vector.load %arg9[%c0_31, %c0_32] : memref<1x1xf32, #tpu.memory_space<vmem>>, vector<1x1xf32>
      %53 = vector.shape_cast %52 : vector<1x1xf32> to vector<1x1xf32>
      %54 = vector.broadcast %53 : vector<1x1xf32> to vector<8x128xf32>
      %c0_33 = arith.constant 0 : index
      %c0_34 = arith.constant 0 : index
      %55 = vector.load %arg7[%c0_33, %c0_34] : memref<8x128xf32, #tpu.memory_space<vmem>>, vector<8x128xf32>
      tpu.vector_store %arg7[%c0_33, %c0_34], %54 {strides = array<i32>} : memref<8x128xf32, #tpu.memory_space<vmem>>, vector<8x128xf32>,
    } else {
    }
    return
  }
  func.func @transform_0(%arg0: i32, %arg1: i32) -> (i32, i32) {
    %c1_i32 = arith.constant 1 : i32
    %0 = arith.muli %arg0, %c1_i32 : i32
    %1 = arith.addi %0, %arg1 : i32
    %c0_i32 = arith.constant 0 : i32
    %2 = arith.minsi %1, %c0_i32 : i32
    %c0_i32_0 = arith.constant 0 : i32
    %c0_i32_1 = arith.constant 0 : i32
    return %2, %c0_i32_0 : i32, i32
  }
  func.func @transform_1(%arg0: i32, %arg1: i32) -> (i32, i32) {
    %c1_i32 = arith.constant 1 : i32
    %0 = arith.muli %arg0, %c1_i32 : i32
    %1 = arith.addi %0, %arg1 : i32
    %c0_i32 = arith.constant 0 : i32
    %2 = arith.minsi %1, %c0_i32 : i32
    %c0_i32_0 = arith.constant 0 : i32
    %c0_i32_1 = arith.constant 0 : i32
    return %2, %c0_i32_0 : i32, i32
  }
  func.func @transform_2(%arg0: i32, %arg1: i32) -> (i32, i32) {
    %c1_i32 = arith.constant 1 : i32
    %0 = arith.muli %arg0, %c1_i32 : i32
    %1 = arith.addi %0, %arg1 : i32
    %c0_i32 = arith.constant 0 : i32
    %2 = arith.minsi %1, %c0_i32 : i32
    %c0_i32_0 = arith.constant 0 : i32
    %c0_i32_1 = arith.constant 0 : i32
    return %2, %c0_i32_0 : i32, i32
  }
  func.func @transform_3(%arg0: i32, %arg1: i32) -> (i32, i32) {
    %c1_i32 = arith.constant 1 : i32
    %0 = arith.muli %arg0, %c1_i32 : i32
    %1 = arith.addi %0, %arg1 : i32
    %c0_i32 = arith.constant 0 : i32
    %2 = arith.minsi %1, %c0_i32 : i32
    %c0_i32_0 = arith.constant 0 : i32
    %c0_i32_1 = arith.constant 0 : i32
    return %2, %c0_i32_0 : i32, i32
  }
  func.func @transform_4(%arg0: i32, %arg1: i32) -> (i32, i32) {
    %c0_i32 = arith.constant 0 : i32
    %c0_i32_0 = arith.constant 0 : i32
    return %arg0, %c0_i32 : i32, i32
  }
  func.func @transform_5(%arg0: i32, %arg1: i32) -> (i32, i32) {
    %c0_i32 = arith.constant 0 : i32
    %c0_i32_0 = arith.constant 0 : i32
    return %arg0, %c0_i32 : i32, i32
  }
}

</mosaic_0001>

<llo_original>
// kernel: tpu_custom_call.1
$region0: #{tpu_custom_call.1}
  #allocation0 [shape = 'u32[]', space=smem, size = 0x4, offset = 0x4, fixed_abs, tag = 'smem constant byte address 0x4 - core index']
  #allocation1 [shape = 'u32[144,128]{1,0:T(1,128)}', space=vmem, size = 0x12000, scoped, tag = 'internal scratch']
  #allocation2 [shape = 'f32[1,1]{1,0:T(1,128)}', space=vmem, size = 0x200, scoped, tag = 'scratch operand']
  #allocation3 [shape = 'f32[1,1]{1,0:T(1,128)}', space=vmem, size = 0x200, scoped, tag = 'scratch operand']
  %s0 = inlined_call_operand.hbm [shape: f32[8,32], index: 0, kind: input, shape index: {}]
  %s1 = inlined_call_operand.hbm [shape: f32[8,32], index: 1, kind: input, shape index: {}]
  %s2 = inlined_call_operand.hbm [shape: f32[8,32], index: 2, kind: input, shape index: {}]
  %s3 = inlined_call_operand.vmem [shape: f32[8,32], index: 3, kind: input, shape index: {}]
  %s4 = inlined_call_operand.hbm [shape: f32[8,128], index: 4, kind: output, shape index: {0}]
  %s5 = inlined_call_operand.hbm [shape: f32[8,128], index: 5, kind: output, shape index: {1}]
  %6 = xla_tuple %s4, %s5
  %s7 = sld [smem:[#allocation0]]
  $region54: #{tpu_custom_call.1} parent=0
    _
  %s9 = ssub.s32 1, %s7
  %s10 = scalar_select 0, %s9, %s7
  $region1: #{tpu_custom_call.1} parent=0
    #allocation4 [shape = 'u8[4096]{0}', space=vmem, size = 0x1000, scoped, tag = 'input window, operand 0, single buffered']
    #allocation5 [shape = 's32[1]{0}', space=sflag, size = 0x4, scoped, tag = 'scoped memory for tpu_custom_call.1']
    #allocation6 [shape = 's32[1]{0}', space=sflag, size = 0x4, scoped, tag = 'scoped memory for tpu_custom_call.1']
    #allocation7 [shape = 'u8[4096]{0}', space=vmem, size = 0x1000, scoped, tag = 'input window, operand 1, single buffered']
    #allocation8 [shape = 's32[1]{0}', space=sflag, size = 0x4, scoped, tag = 'scoped memory for tpu_custom_call.1']
    #allocation9 [shape = 'u8[4096]{0}', space=vmem, size = 0x1000, scoped, tag = 'input window, operand 2, single buffered']
    #allocation10 [shape = 'u8[4096]{0}', space=vmem, size = 0x1000, scoped, tag = 'output window, operand 0, single buffered']
    #allocation11 [shape = 'u8[4096]{0}', space=vmem, size = 0x1000, scoped, tag = 'output window, operand 1, single buffered']
    #allocation12 [shape = 's32[1]{0}', space=sflag, size = 0x4, scoped, tag = 'scoped memory for tpu_custom_call.1']
    %11 = vsyncpa [#allocation5], 0
    %12 = vsyncpa [#allocation8], 0
    %13 = vsyncpa [#allocation6], 0
    %14 = vsyncpa [#allocation12], 0
    // Predicated region
    $region2: #{tpu_custom_call.1} parent=1 // pred_check
      _
    $region3: #{tpu_custom_call.1} parent=1 // pred_check_branch
      %16 = sbr.rel (0) target = $region5
    $region4: #{tpu_custom_call.1} parent=1 // pred_region
      %s17 = sadd.s32 0, 0
      %p18 = scmp.lt.s32.totalorder %s17, 0
      %s19 = scalar_select %p18, %s17, 0
      %s21 = ssub.s32 128, 128
      %22 = vsyncadd [#allocation5], %s21
      %s23 = smul.addr %s19, 128
      %s24 = scalar_lea.hbm %s0, %s23
      %s26 = sshll.u32 [#allocation4], 4
      %s27 = int_to_ptr.vmem [resolvable:$true] %s26
      %29 = dma.hbm_to_vmem [thread:$0]  %s24, 128, %s27, [#allocation5]
    $region5: #{tpu_custom_call.1} parent=1 // pred_fallthru
      _
    // Predicated region
    $region6: #{tpu_custom_call.1} parent=1 // pred_check
      _
    $region7: #{tpu_custom_call.1} parent=1 // pred_check_branch
      %31 = sbr.rel (0) target = $region9
    $region8: #{tpu_custom_call.1} parent=1 // pred_region
      %s32 = sadd.s32 0, 0
      %p33 = scmp.lt.s32.totalorder %s32, 0
      %s34 = scalar_select %p33, %s32, 0
      %s36 = ssub.s32 128, 128
      %37 = vsyncadd [#allocation8], %s36
      %s38 = smul.addr %s34, 128
      %s39 = scalar_lea.hbm %s1, %s38
      %s41 = sshll.u32 [#allocation7], 4
      %s42 = int_to_ptr.vmem [resolvable:$true] %s41
      %44 = dma.hbm_to_vmem [thread:$0]  %s39, 128, %s42, [#allocation8]
    $region9: #{tpu_custom_call.1} parent=1 // pred_fallthru
      _
    // Predicated region
    $region10: #{tpu_custom_call.1} parent=1 // pred_check
      _
    $region11: #{tpu_custom_call.1} parent=1 // pred_check_branch
      %46 = sbr.rel (0) target = $region13
    $region12: #{tpu_custom_call.1} parent=1 // pred_region
      %s47 = sadd.s32 0, 0
      %p48 = scmp.lt.s32.totalorder %s47, 0
      %s49 = scalar_select %p48, %s47, 0
      %s51 = ssub.s32 128, 128
      %52 = vsyncadd [#allocation8], %s51
      %s53 = smul.addr %s49, 128
      %s54 = scalar_lea.hbm %s2, %s53
      %s56 = sshll.u32 [#allocation9], 4
      %s57 = int_to_ptr.vmem [resolvable:$true] %s56
      %59 = dma.hbm_to_vmem [thread:$0]  %s54, 128, %s57, [#allocation8]
    $region13: #{tpu_custom_call.1} parent=1 // pred_fallthru
      _
    // Predicated region
    $region14: #{tpu_custom_call.1} parent=1 // pred_check
      _
    $region15: #{tpu_custom_call.1} parent=1 // pred_check_branch
      %61 = sbr.rel (0) target = $region17
    $region16: #{tpu_custom_call.1} parent=1 // pred_region
      %s62 = sadd.s32 0, 0
      %p63 = scmp.lt.s32.totalorder %s62, 0
      %s64 = scalar_select %p63, %s62, 0
      %p65 = scmp.lt.s32.totalorder %s64, 0
      %s66 = scalar_select %p65, %s64, 0
      %s67 = smul.addr %s66, 8
      %s68 = scalar_lea.vmem %s3, %s67
      %s69 = sadd.s32 0, 0
      %p70 = scmp.lt.s32.totalorder %s69, 0
      %s71 = scalar_select %p70, %s69, 0
    $region17: #{tpu_custom_call.1} parent=1 // pred_fallthru
      _
    // Predicated region
    $region18: #{tpu_custom_call.1} parent=1 // pred_check
      _
    $region19: #{tpu_custom_call.1} parent=1 // pred_check_branch
      %73 = sbr.rel (0) target = $region21
    $region20: #{tpu_custom_call.1} parent=1 // pred_region
      %74 = dma.done [#allocation5], 128
    $region21: #{tpu_custom_call.1} parent=1 // pred_fallthru
      _
    // Predicated region
    $region22: #{tpu_custom_call.1} parent=1 // pred_check
      _
    $region23: #{tpu_custom_call.1} parent=1 // pred_check_branch
      %76 = sbr.rel (0) target = $region25
    $region24: #{tpu_custom_call.1} parent=1 // pred_region
      %77 = dma.done [#allocation8], 128
    $region25: #{tpu_custom_call.1} parent=1 // pred_fallthru
      _
    // Predicated region
    $region26: #{tpu_custom_call.1} parent=1 // pred_check
      _
    $region27: #{tpu_custom_call.1} parent=1 // pred_check_branch
      %79 = sbr.rel (0) target = $region29
    $region28: #{tpu_custom_call.1} parent=1 // pred_region
      %80 = dma.done [#allocation8], 128
    $region29: #{tpu_custom_call.1} parent=1 // pred_fallthru
      _
    %s81 = sadd.s32 0, 0
    %p82 = scmp.lt.s32.totalorder %s81, 0
    %s83 = scalar_select %p82, %s81, 0
    %p84 = scmp.lt.s32.totalorder %s83, 0
    %s85 = scalar_select %p84, %s83, 0
    %s86 = smul.addr %s85, 8
    %s87 = scalar_lea.vmem %s3, %s86
    %s88 = sadd.s32 0, 0
    %p89 = scmp.lt.s32.totalorder %s88, 0
    %s90 = scalar_select %p89, %s88, 0
    %s91 = sadd.s32 0, 0
    %p92 = scmp.lt.s32.totalorder %s91, 0
    %s93 = scalar_select %p92, %s91, 0
    %s94 = sadd.s32 0, 0
    %p95 = scmp.lt.s32.totalorder %s94, 0
    %s96 = scalar_select %p95, %s94, 0
    %s97 = sadd.s32 0, 0
    %p98 = scmp.lt.s32.totalorder %s97, 0
    %s99 = scalar_select %p98, %s97, 0
    %p100 = scmp.lt.s32.totalorder %s99, 0
    %s101 = scalar_select %p100, %s99, 0
    %s102 = smul.addr %s101, 8
    %s103 = scalar_lea.vmem %s3, %s102
    %s104 = sadd.s32 0, 0
    %p105 = scmp.lt.s32.totalorder %s104, 0
    %s106 = scalar_select %p105, %s104, 0
    %p107 = scmp.eq.s32.totalorder 0, 0
    // Predicated region
    $region30: #{tpu_custom_call.1} parent=1 // pred_check
      %p108 = pneg %p107
    $region31: #{tpu_custom_call.1} parent=1 // pred_check_branch
      %110 = sbr.rel (%p108) target = $region33
    $region32: #{tpu_custom_call.1} parent=1 // pred_region
      %vm111 = vcmask 0
      %112 = vst.msk [vmem:[#allocation2] sm:$0x1] %vm111, 0.0
      %113 = vst.msk [vmem:[#allocation3] sm:$0x1] %vm111, 0.0
    $region33: #{tpu_custom_call.1} parent=1 // pred_fallthru
      _
    %v114 = vld [vmem:[#allocation4] sm:$0xff]
    %v115 = vld [vmem:[#allocation7] sm:$0xff]
    %v116 = vld [vmem:[#allocation9] sm:$0xff]
    %v117 = vld [vmem:[%s103] sm:$0xff]
    %v118 = vsub.f32 %v114, %v115
    %v119 = vsub.f32 %v116, %v117
    %v120 = vmul.f32 %v118, %v118
    %vm121 = vcmask 261120
    %v122 = vsel %vm121, %v120, 0.0
    %123 = vadd.xlane.f32.xlu0 %v122
    %v124 = vpop.xlane.xlu0 %123
    %v125 = vmul.f32 %v119, %v119
    %v126 = vsel %vm121, %v125, 0.0
    %127 = vadd.xlane.f32.xlu0 %v126
    %v128 = vpop.xlane.xlu0 %127
    %v129 = vadd.f32 %v124, 1e-09
    %v130 = vrsqrt.pop %v129
    %v131 = vmul.f32 %v129, %v130
    %vm132 = vcmp.eq.f32.partialorder %v129, inf
    %v133 = vsel %vm132, %v129, %v131
    %vm134 = vcmp.eq.f32.partialorder %v129, 0.0
    %v135 = vand.u32 %v129, 2147483648
    %v136 = vsel %vm134, %v135, %v133
    %v137 = vsub.f32 1.0, %v136
    %v138 = vmax.f32 %v137, 0.0
    %v139 = vmul.f32 %v138, %v138
    %s140 = sadd.s32 0, 0
    %s141 = smul.u32 %s140, 8
    %v142 = vlaneseq
    %v143 = vshrl.u32 %v142, 7
    %v144 = vstv %s141
    %v145 = vadd.s32 %v144, %v143
    %vm146 = vcmp.lt.s32.totalorder %v145, 8
    %v147 = vsel %vm146, %v139, 0.0
    %v148 = vsel %vm146, %v128, 0.0
    %v149 = vld [vmem:[#allocation2] sm:$0x1]
    %v150 = vrot.slane %v147, 4
    %v151 = vadd.f32 %v147, %v150
    %v152 = vrot.slane %v151, 2
    %v153 = vadd.f32 %v151, %v152
    %v154 = vrot.slane %v153, 1
    %v155 = vadd.f32 %v153, %v154
    %v156 = vadd.f32 %v149, %v155
    %vm157 = vcmask 0
    %158 = vst.msk [vmem:[#allocation2] sm:$0x1] %vm157, %v156
    %v159 = vld [vmem:[#allocation3] sm:$0x1]
    %v160 = vrot.slane %v148, 4
    %v161 = vadd.f32 %v148, %v160
    %v162 = vrot.slane %v161, 2
    %v163 = vadd.f32 %v161, %v162
    %v164 = vrot.slane %v163, 1
    %v165 = vadd.f32 %v163, %v164
    %v166 = vadd.f32 %v159, %v165
    %167 = vst.msk [vmem:[#allocation3] sm:$0x1] %vm157, %v166
    // Predicated region
    $region34: #{tpu_custom_call.1} parent=1 // pred_check
      %p168 = pneg %p107
    $region35: #{tpu_custom_call.1} parent=1 // pred_check_branch
      %170 = sbr.rel (%p168) target = $region37
    $region36: #{tpu_custom_call.1} parent=1 // pred_region
      %v171 = vld [vmem:[#allocation2] sm:$0x1]
      %v173 = vlaneseq
      %v174 = vshrl.u32 %v173, 7
      %v175 = vsub.s32 0, %v174
      %v176 = vrot.slane %v171, %v175
      %177 = vset.pattern.permute.xlu0 0
      %178 = vperm.xlu0 %177, %v176
      %v179 = vpop.permute.xlu0 %178
      %181 = vst [vmem:[#allocation10] sm:$0xff] %v179
      %v182 = vld [vmem:[#allocation3] sm:$0x1]
      %v184 = vlaneseq
      %v185 = vshrl.u32 %v184, 7
      %v186 = vsub.s32 0, %v185
      %v187 = vrot.slane %v182, %v186
      %188 = vset.pattern.permute.xlu0 0
      %189 = vperm.xlu0 %188, %v187
      %v190 = vpop.permute.xlu0 %189
      %192 = vst [vmem:[#allocation11] sm:$0xff] %v190
    $region37: #{tpu_custom_call.1} parent=1 // pred_fallthru
      _
    // Predicated region
    $region38: #{tpu_custom_call.1} parent=1 // pred_check
      _
    $region39: #{tpu_custom_call.1} parent=1 // pred_check_branch
      %194 = sbr.rel (0) target = $region41
    $region40: #{tpu_custom_call.1} parent=1 // pred_region
      %s196 = ssub.s32 128, 128
      %197 = vsyncadd [#allocation6], %s196
      %s199 = sshll.u32 [#allocation10], 4
      %s200 = int_to_ptr.vmem [resolvable:$true] %s199
      %202 = dma.vmem_to_hbm [thread:$0]  %s200, 128, %s4, [#allocation6]
    $region41: #{tpu_custom_call.1} parent=1 // pred_fallthru
      _
    // Predicated region
    $region42: #{tpu_custom_call.1} parent=1 // pred_check
      _
    $region43: #{tpu_custom_call.1} parent=1 // pred_check_branch
      %204 = sbr.rel (0) target = $region45
    $region44: #{tpu_custom_call.1} parent=1 // pred_region
      %s206 = ssub.s32 128, 128
      %207 = vsyncadd [#allocation12], %s206
      %s209 = sshll.u32 [#allocation11], 4
      %s210 = int_to_ptr.vmem [resolvable:$true] %s209
      %212 = dma.vmem_to_hbm [thread:$0]  %s210, 128, %s5, [#allocation12]
    $region45: #{tpu_custom_call.1} parent=1 // pred_fallthru
      _
    // Predicated region
    $region46: #{tpu_custom_call.1} parent=1 // pred_check
      _
    $region47: #{tpu_custom_call.1} parent=1 // pred_check_branch
      %214 = sbr.rel (0) target = $region49
    $region48: #{tpu_custom_call.1} parent=1 // pred_region
      %215 = dma.done [#allocation6], 128
    $region49: #{tpu_custom_call.1} parent=1 // pred_fallthru
      _
    // Predicated region
    $region50: #{tpu_custom_call.1} parent=1 // pred_check
      _
    $region51: #{tpu_custom_call.1} parent=1 // pred_check_branch
      %217 = sbr.rel (0) target = $region53
    $region52: #{tpu_custom_call.1} parent=1 // pred_region
      %218 = dma.done [#allocation12], 128
    $region53: #{tpu_custom_call.1} parent=1 // pred_fallthru
      _
    %219 = vsyncpa [#allocation5], 1
    %220 = vsyncpa [#allocation8], 1
    %221 = vsyncpa [#allocation6], 1
    %222 = vsyncpa [#allocation12], 1

</llo_original>
